<compile_context>
chip_gen: v7x
topology: tpu7x:2x2x1
jax: 0.10.0
libtpu: 0.0.40
codegen_flags: <defaults>
</compile_context>

<pallas_src>
import functools

import jax
import jax.numpy as jnp
from jax.experimental import pallas as pl
from jax.experimental.pallas import tpu as pltpu

DP = 128  # padded output-feature (lane) width -> lane-dense stores, full MXU N


def _rup(x, m):
    return ((x + m - 1) // m) * m


def _pad2(x, rows, cols):
    return jnp.pad(x, ((0, rows - x.shape[0]), (0, cols - x.shape[1])))


# ----------------------------------------------------------------------------
# Fused Pallas kernel
# ----------------------------------------------------------------------------
def _gn_fused_kernel(*refs, de_p, dv_p, e_out_p, v_out_p,
                     num_nodes, num_edges, compute_global):
    if compute_global:
        (src_ref, dstc_ref, dstr_ref, hv_ref, he_ref,
         we_ref, wn_ref, wg_ref, b_ref,
         he_out_ref, hv_out_ref, u_out_ref) = refs
    else:
        (src_ref, dstc_ref, dstr_ref, hv_ref, he_ref,
         we_ref, wn_ref, b_ref,
         he_out_ref, hv_out_ref) = refs

    f32 = jnp.float32
    hv = hv_ref[...]                                   # [N, dv_p]
    he = he_ref[...]                                   # [E, de_p]
    bias = b_ref[...]                                  # [2 or 3, DP]
    be = bias[0:1, :]                                  # u@W_eu + b_e (pre-folded)
    bn = bias[1:2, :]                                  # u@W_nu + b_n (pre-folded)

    # ---------------- edge block ----------------
    # Sublane-aligned static slices of the stacked edge weight.
    we_e = we_ref[0:de_p, :]                           # [de_p, DP]
    we_s = we_ref[de_p:de_p + dv_p, :]                 # [dv_p, DP]
    we_d = we_ref[de_p + dv_p:de_p + 2 * dv_p, :]      # [dv_p, DP]

    # Project node features once, then gather per-edge rows with one-hot
    # [E,N] masks on the MXU (exact in f32; fine at toy N,E -- see TODO above).
    proj_src = jnp.dot(hv, we_s, preferred_element_type=f32)   # [N, DP]
    proj_dst = jnp.dot(hv, we_d, preferred_element_type=f32)   # [N, DP]

    nid_en = jax.lax.broadcasted_iota(jnp.int32, (num_edges, num_nodes), 1)
    src_gather = (nid_en == src_ref[...]).astype(f32)          # [E, N]
    dst_gather = (nid_en == dstc_ref[...]).astype(f32)         # [E, N]

    he_new = jnp.dot(he, we_e, preferred_element_type=f32)
    he_new = he_new + jnp.dot(src_gather, proj_src, preferred_element_type=f32)
    he_new = he_new + jnp.dot(dst_gather, proj_dst, preferred_element_type=f32)
    he_new = jnp.maximum(he_new + be, 0.0)                     # [E, DP]
    he_out_ref[...] = he_new.astype(he_out_ref.dtype)

    # ---------------- node block ----------------
    # Scatter-add of incoming edge messages via a one-hot [N,E] mask matmul,
    # done on the narrow (e_out_p-wide) view so wn_a keeps short-K rows.
    he_new_s = he_new[:, :e_out_p]                             # [E, e_out_p]
    nid_ne = jax.lax.broadcasted_iota(jnp.int32, (num_nodes, num_edges), 0)
    scatter = (nid_ne == dstr_ref[...]).astype(f32)            # [N, E]
    agg = jnp.dot(scatter, he_new_s, preferred_element_type=f32)   # [N, e_out_p]

    wn_v = wn_ref[0:dv_p, :]                                   # [dv_p, DP]
    wn_a = wn_ref[dv_p:dv_p + e_out_p, :]                      # [e_out_p, DP]
    hv_new = jnp.dot(hv, wn_v, preferred_element_type=f32)
    hv_new = hv_new + jnp.dot(agg, wn_a, preferred_element_type=f32)
    hv_new = jnp.maximum(hv_new + bn, 0.0)                     # [N, DP]
    hv_out_ref[...] = hv_new.astype(hv_out_ref.dtype)

    # ---------------- global block ----------------
    if compute_global:
        bg = bias[2:3, :]                                      # u@W_gu + b_g
        wg_v = wg_ref[0:v_out_p, :]                            # [v_out_p, DP]
        wg_e = wg_ref[v_out_p:v_out_p + e_out_p, :]            # [e_out_p, DP]
        mean_v = jnp.mean(hv_new[:, :v_out_p], axis=0, keepdims=True)  # [1, v_out_p]
        mean_e = jnp.mean(he_new_s, axis=0, keepdims=True)             # [1, e_out_p]
        u_new = jnp.dot(mean_v, wg_v, preferred_element_type=f32)
        u_new = u_new + jnp.dot(mean_e, wg_e, preferred_element_type=f32)
        u_out_ref[...] = (u_new + bg).astype(u_out_ref.dtype)


# ----------------------------------------------------------------------------
# Wrapper
# ----------------------------------------------------------------------------
def gn_layer_forward(graph, global_attr, params, use_global_block=True,
                     slice_outputs=True):
    """graph: dict with 'h_v' [N,Dv], 'h_e' [E,De], 'src' [E], 'dst' [E]."""
    h_v, h_e = graph["h_v"], graph["h_e"]
    src, dst = graph["src"], graph["dst"]
    N, Dv = h_v.shape
    E, De = h_e.shape
    Dg = global_attr.shape[-1]
    De_out = params["b_edge"].shape[0]
    Dv_out = params["b_node"].shape[0]

    # Sublane-aligned (multiple-of-8) K pads; lane dim padded to DP=128.
    dv_p, de_p = _rup(Dv, 8), _rup(De, 8)
    e_out_p, v_out_p = _rup(De_out, 8), _rup(Dv_out, 8)

    W_e, W_n = params["W_edge"], params["W_node"]
    u_row = global_attr.reshape(1, Dg).astype(jnp.float32)

    # --- stacked edge / node weights (rows padded to 8-multiple, cols to 128)
    w_edge = jnp.concatenate([
        _pad2(W_e[:De], de_p, DP),                    # he   rows
        _pad2(W_e[De:De + Dv], dv_p, DP),             # src  rows
        _pad2(W_e[De + Dv:De + 2 * Dv], dv_p, DP),    # dst  rows
    ], axis=0)
    w_node = jnp.concatenate([
        _pad2(W_n[:Dv], dv_p, DP),                    # hv   rows
        _pad2(W_n[Dv:Dv + De_out], e_out_p, DP),      # agg  rows
    ], axis=0)

    # --- u-path folded into effective biases (u is a per-call constant).
    be_eff = u_row @ W_e[De + 2 * Dv:] + params["b_edge"][None, :]
    bn_eff = u_row @ W_n[Dv + De_out:] + params["b_node"][None, :]
    bias_rows = [_pad2(be_eff, 1, DP), _pad2(bn_eff, 1, DP)]

    operands = [
        src.reshape(E, 1).astype(jnp.int32),
        dst.reshape(E, 1).astype(jnp.int32),
        dst.reshape(1, E).astype(jnp.int32),
        _pad2(h_v, N, dv_p),
        _pad2(h_e, E, de_p),
        w_edge,
        w_node,
    ]
    out_shapes = [
        jax.ShapeDtypeStruct((E, DP), h_e.dtype),
        jax.ShapeDtypeStruct((N, DP), h_v.dtype),
    ]
    if use_global_block:
        w_glob = jnp.concatenate([
            _pad2(params["W_g_v"], v_out_p, DP),
            _pad2(params["W_g_e"], e_out_p, DP),
        ], axis=0)
        operands.append(w_glob)
        bg_eff = u_row @ params["W_g_u"] + params["b_g"][None, :]
        bias_rows.append(_pad2(bg_eff, 1, DP))
        out_shapes.append(jax.ShapeDtypeStruct((1, DP), global_attr.dtype))
    operands.append(jnp.concatenate(bias_rows, axis=0))

    kernel = functools.partial(
        _gn_fused_kernel, de_p=de_p, dv_p=dv_p, e_out_p=e_out_p,
        v_out_p=v_out_p, num_nodes=N, num_edges=E,
        compute_global=use_global_block)

    outs = pl.pallas_call(
        kernel,
        out_shape=tuple(out_shapes),
        grid=(1,),
        in_specs=[pl.BlockSpec(x.shape, lambda i: (0, 0)) for x in operands],
        out_specs=tuple(pl.BlockSpec(s.shape, lambda i: (0, 0))
                        for s in out_shapes),
        compiler_params=pltpu.CompilerParams(
            dimension_semantics=("arbitrary",)),
    )(*operands)

    if use_global_block:
        he_out, hv_out, u_out = outs
    else:
        he_out, hv_out = outs
        u_out = None

    new_graph = dict(graph)
    if slice_outputs:
        new_graph["h_e"] = he_out[:, :De_out]        # out_edge_key='h_e'
        new_graph["h_v"] = hv_out[:, :Dv_out]        # out_node_key='h_v'
        out_global = u_out[:, :Dg] if use_global_block else global_attr
    else:
        # Keep padded lane-dense layout for stacked layers; slice once at end.
        new_graph["h_e"] = he_out
        new_graph["h_v"] = hv_out
        out_global = u_out if use_global_block else global_attr
    return new_graph, out_global


# ----------------------------------------------------------------------------
# Pure-JAX reference for verification
# ----------------------------------------------------------------------------
def gn_layer_reference(graph, global_attr, params):
    h_v, h_e = graph["h_v"], graph["h_e"]
    src, dst = graph["src"], graph["dst"]
    N, E = h_v.shape[0], h_e.shape[0]
    u_e = jnp.broadcast_to(global_attr, (E, global_attr.shape[-1]))
    edge_in = jnp.concatenate([h_e, h_v[src], h_v[dst], u_e], axis=-1)
    h_e_new = jnp.maximum(edge_in @ params["W_edge"] + params["b_edge"], 0.0)
    agg = jax.ops.segment_sum(h_e_new, dst, num_segments=N)
    u_v = jnp.broadcast_to(global_attr, (N, global_attr.shape[-1]))
    node_in = jnp.concatenate([h_v, agg, u_v], axis=-1)
    h_v_new = jnp.maximum(node_in @ params["W_node"] + params["b_node"], 0.0)
    u_new = (
        jnp.mean(h_v_new, axis=0, keepdims=True) @ params["W_g_v"]
        + jnp.mean(h_e_new, axis=0, keepdims=True) @ params["W_g_e"]
        + global_attr @ params["W_g_u"]
        + params["b_g"]
    )
    return h_e_new, h_v_new, u_new


# ----------------------------------------------------------------------------
if __name__ == "__main__":
    N, E = 8, 16          # nodes, edges
    Dv, De, Dg = 8, 8, 8  # node / edge / global feature dims
    De_out, Dv_out = 8, 8

    key = jax.random.PRNGKey(0)
    k = jax.random.split(key, 12)

    graph = {
        "h_v": jax.random.normal(k[0], (N, Dv), jnp.float32),
        "h_e": jax.random.normal(k[1], (E, De), jnp.float32),
        "src": jax.random.randint(k[2], (E,), 0, N, jnp.int32),
        "dst": jax.random.randint(k[3], (E,), 0, N, jnp.int32),
    }
    global_attr = jax.random.normal(k[4], (1, Dg), jnp.float32)

    scale = 0.1
    params = {
        "W_edge": scale * jax.random.normal(k[5], (De + 2 * Dv + Dg, De_out), jnp.float32),
        "b_edge": scale * jax.random.normal(k[6], (De_out,), jnp.float32),
        "W_node": scale * jax.random.normal(k[7], (Dv + De_out + Dg, Dv_out), jnp.float32),
        "b_node": scale * jax.random.normal(k[8], (Dv_out,), jnp.float32),
        "W_g_v": scale * jax.random.normal(k[9], (Dv_out, Dg), jnp.float32),
        "W_g_e": scale * jax.random.normal(k[10], (De_out, Dg), jnp.float32),
        "W_g_u": scale * jax.random.normal(k[11], (Dg, Dg), jnp.float32),
        "b_g": jnp.zeros((Dg,), jnp.float32),
    }

    out_graph, out_u = gn_layer_forward(graph, global_attr, params)
    jax.block_until_ready(out_graph["h_v"])
    jax.block_until_ready(out_graph["h_e"])
    jax.block_until_ready(out_u)

    ref_he, ref_hv, ref_u = gn_layer_reference(graph, global_attr, params)
    assert jnp.allclose(out_graph["h_e"], ref_he, atol=1e-5, rtol=1e-5)
    assert jnp.allclose(out_graph["h_v"], ref_hv, atol=1e-5, rtol=1e-5)
    assert jnp.allclose(out_u, ref_u, atol=1e-5, rtol=1e-5)

    print("KERNEL_OK")
</pallas_src>

<mosaic_0001>
module attributes {stable_mosaic.version = 11 : i64} {
  func.func @_gn_fused_kernel(%arg0: i32, %arg1: memref<16x1xi32, #tpu.memory_space<vmem>>, %arg2: memref<16x1xi32, #tpu.memory_space<vmem>>, %arg3: memref<1x16xi32, #tpu.memory_space<vmem>>, %arg4: memref<8x8xf32, #tpu.memory_space<vmem>>, %arg5: memref<16x8xf32, #tpu.memory_space<vmem>>, %arg6: memref<24x128xf32, #tpu.memory_space<vmem>>, %arg7: memref<16x128xf32, #tpu.memory_space<vmem>>, %arg8: memref<16x128xf32, #tpu.memory_space<vmem>>, %arg9: memref<3x128xf32, #tpu.memory_space<vmem>>, %arg10: memref<16x128xf32, #tpu.memory_space<vmem>>, %arg11: memref<8x128xf32, #tpu.memory_space<vmem>>, %arg12: memref<1x128xf32, #tpu.memory_space<vmem>>) attributes {dimension_semantics = [#tpu.dimension_semantics<arbitrary>], iteration_bounds = array<i64: 1>, scalar_prefetch = 0 : i64, scratch_operands = 0 : i64, tpu.core_type = #tpu.core_type<tc>, window_params = [{pipeline_mode = #tpu.pipeline_mode<synchronous>, transform_indices = @transform_0, window_bounds = array<i64: 16, 1>}, {pipeline_mode = #tpu.pipeline_mode<synchronous>, transform_indices = @transform_1, window_bounds = array<i64: 16, 1>}, {pipeline_mode = #tpu.pipeline_mode<synchronous>, transform_indices = @transform_2, window_bounds = array<i64: 1, 16>}, {pipeline_mode = #tpu.pipeline_mode<synchronous>, transform_indices = @transform_3, window_bounds = array<i64: 8, 8>}, {pipeline_mode = #tpu.pipeline_mode<synchronous>, transform_indices = @transform_4, window_bounds = array<i64: 16, 8>}, {pipeline_mode = #tpu.pipeline_mode<synchronous>, transform_indices = @transform_5, window_bounds = array<i64: 24, 128>}, {pipeline_mode = #tpu.pipeline_mode<synchronous>, transform_indices = @transform_6, window_bounds = array<i64: 16, 128>}, {pipeline_mode = #tpu.pipeline_mode<synchronous>, transform_indices = @transform_7, window_bounds = array<i64: 16, 128>}, {pipeline_mode = #tpu.pipeline_mode<synchronous>, transform_indices = @transform_8, window_bounds = array<i64: 3, 128>}, {pipeline_mode = #tpu.pipeline_mode<synchronous>, transform_indices = @transform_9, window_bounds = array<i64: 16, 128>}, {pipeline_mode = #tpu.pipeline_mode<synchronous>, transform_indices = @transform_10, window_bounds = array<i64: 8, 128>}, {pipeline_mode = #tpu.pipeline_mode<synchronous>, transform_indices = @transform_11, window_bounds = array<i64: 1, 128>}]} {
    %c0 = arith.constant 0 : index
    %c0_0 = arith.constant 0 : index
    %0 = vector.load %arg4[%c0, %c0_0] : memref<8x8xf32, #tpu.memory_space<vmem>>, vector<8x8xf32>
    %c0_1 = arith.constant 0 : index
    %c0_2 = arith.constant 0 : index
    %1 = vector.load %arg5[%c0_1, %c0_2] : memref<16x8xf32, #tpu.memory_space<vmem>>, vector<16x8xf32>
    %c0_3 = arith.constant 0 : index
    %c0_4 = arith.constant 0 : index
    %2 = vector.load %arg9[%c0_3, %c0_4] : memref<3x128xf32, #tpu.memory_space<vmem>>, vector<3x128xf32>
    %3 = vector.extract_strided_slice %2 {offsets = [0, 0], sizes = [1, 128], strides = [1, 1]} : vector<3x128xf32> to vector<1x128xf32>
    %4 = vector.extract_strided_slice %2 {offsets = [1, 0], sizes = [1, 128], strides = [1, 1]} : vector<3x128xf32> to vector<1x128xf32>
    %c0_5 = arith.constant 0 : index
    %c0_6 = arith.constant 0 : index
    %5 = vector.load %arg6[%c0_5, %c0_6] : memref<24x128xf32, #tpu.memory_space<vmem>>, vector<8x128xf32>
    %c8 = arith.constant 8 : index
    %c0_7 = arith.constant 0 : index
    %6 = vector.load %arg6[%c8, %c0_7] : memref<24x128xf32, #tpu.memory_space<vmem>>, vector<8x128xf32>
    %c16 = arith.constant 16 : index
    %c0_8 = arith.constant 0 : index
    %7 = vector.load %arg6[%c16, %c0_8] : memref<24x128xf32, #tpu.memory_space<vmem>>, vector<8x128xf32>
    %cst = arith.constant dense<0.000000e+00> : vector<8x128xf32>
    %8 = tpu.matmul %0, %6, %cst {dimension_numbers = #tpu.dot_dimension_numbers<[1], [0], [0], [1], [0, 0, 1, 1], [], []>} : vector<8x8xf32>, vector<8x128xf32>, vector<8x128xf32> -> vector<8x128xf32>
    %cst_9 = arith.constant dense<0.000000e+00> : vector<8x128xf32>
    %9 = tpu.matmul %0, %7, %cst_9 {dimension_numbers = #tpu.dot_dimension_numbers<[1], [0], [0], [1], [0, 0, 1, 1], [], []>} : vector<8x8xf32>, vector<8x128xf32>, vector<8x128xf32> -> vector<8x128xf32>
    %10 = tpu.iota {dimensions = array<i32: 1>} : vector<16x8xi32>
    %c0_10 = arith.constant 0 : index
    %c0_11 = arith.constant 0 : index
    %11 = vector.load %arg1[%c0_10, %c0_11] : memref<16x1xi32, #tpu.memory_space<vmem>>, vector<16x1xi32>
    %12 = vector.broadcast %11 : vector<16x1xi32> to vector<16x8xi32>
    %13 = arith.cmpi eq, %10, %12 : vector<16x8xi32>
    %14 = arith.extui %13 : vector<16x8xi1> to vector<16x8xi32>
    %15 = arith.sitofp %14 : vector<16x8xi32> to vector<16x8xf32>
    %c0_12 = arith.constant 0 : index
    %c0_13 = arith.constant 0 : index
    %16 = vector.load %arg2[%c0_12, %c0_13] : memref<16x1xi32, #tpu.memory_space<vmem>>, vector<16x1xi32>
    %17 = vector.broadcast %16 : vector<16x1xi32> to vector<16x8xi32>
    %18 = arith.cmpi eq, %10, %17 : vector<16x8xi32>
    %19 = arith.extui %18 : vector<16x8xi1> to vector<16x8xi32>
    %20 = arith.sitofp %19 : vector<16x8xi32> to vector<16x8xf32>
    %cst_14 = arith.constant dense<0.000000e+00> : vector<16x128xf32>
    %21 = tpu.matmul %1, %5, %cst_14 {dimension_numbers = #tpu.dot_dimension_numbers<[1], [0], [0], [1], [0, 0, 1, 1], [], []>} : vector<16x8xf32>, vector<8x128xf32>, vector<16x128xf32> -> vector<16x128xf32>
    %cst_15 = arith.constant dense<0.000000e+00> : vector<16x128xf32>
    %22 = tpu.matmul %15, %8, %cst_15 {dimension_numbers = #tpu.dot_dimension_numbers<[1], [0], [0], [1], [0, 0, 1, 1], [], []>} : vector<16x8xf32>, vector<8x128xf32>, vector<16x128xf32> -> vector<16x128xf32>
    %23 = arith.addf %21, %22 : vector<16x128xf32>
    %cst_16 = arith.constant dense<0.000000e+00> : vector<16x128xf32>
    %24 = tpu.matmul %20, %9, %cst_16 {dimension_numbers = #tpu.dot_dimension_numbers<[1], [0], [0], [1], [0, 0, 1, 1], [], []>} : vector<16x8xf32>, vector<8x128xf32>, vector<16x128xf32> -> vector<16x128xf32>
    %25 = arith.addf %23, %24 : vector<16x128xf32>
    %26 = vector.broadcast %3 : vector<1x128xf32> to vector<16x128xf32>
    %27 = arith.addf %25, %26 : vector<16x128xf32>
    %cst_17 = arith.constant 0.000000e+00 : f32
    %28 = vector.broadcast %cst_17 : f32 to vector<16x128xf32>
    %29 = arith.maximumf %27, %28 : vector<16x128xf32>
    %c0_18 = arith.constant 0 : index
    %c0_19 = arith.constant 0 : index
    %30 = vector.load %arg10[%c0_18, %c0_19] : memref<16x128xf32, #tpu.memory_space<vmem>>, vector<16x128xf32>
    tpu.vector_store %arg10[%c0_18, %c0_19], %29 {strides = array<i32>} : memref<16x128xf32, #tpu.memory_space<vmem>>, vector<16x128xf32>,
    %31 = vector.extract_strided_slice %29 {offsets = [0, 0], sizes = [16, 8], strides = [1, 1]} : vector<16x128xf32> to vector<16x8xf32>
    %32 = tpu.iota {dimensions = array<i32: 0>} : vector<8x16xi32>
    %c0_20 = arith.constant 0 : index
    %c0_21 = arith.constant 0 : index
    %33 = vector.load %arg3[%c0_20, %c0_21] : memref<1x16xi32, #tpu.memory_space<vmem>>, vector<1x16xi32>
    %34 = vector.broadcast %33 : vector<1x16xi32> to vector<8x16xi32>
    %35 = arith.cmpi eq, %32, %34 : vector<8x16xi32>
    %36 = arith.extui %35 : vector<8x16xi1> to vector<8x16xi32>
    %37 = arith.sitofp %36 : vector<8x16xi32> to vector<8x16xf32>
    %cst_22 = arith.constant dense<0.000000e+00> : vector<8x8xf32>
    %38 = tpu.matmul %37, %31, %cst_22 {dimension_numbers = #tpu.dot_dimension_numbers<[1], [0], [0], [1], [0, 0, 1, 1], [], []>} : vector<8x16xf32>, vector<16x8xf32>, vector<8x8xf32> -> vector<8x8xf32>
    %c0_23 = arith.constant 0 : index
    %c0_24 = arith.constant 0 : index
    %39 = vector.load %arg7[%c0_23, %c0_24] : memref<16x128xf32, #tpu.memory_space<vmem>>, vector<8x128xf32>
    %c8_25 = arith.constant 8 : index
    %c0_26 = arith.constant 0 : index
    %40 = vector.load %arg7[%c8_25, %c0_26] : memref<16x128xf32, #tpu.memory_space<vmem>>, vector<8x128xf32>
    %cst_27 = arith.constant dense<0.000000e+00> : vector<8x128xf32>
    %41 = tpu.matmul %0, %39, %cst_27 {dimension_numbers = #tpu.dot_dimension_numbers<[1], [0], [0], [1], [0, 0, 1, 1], [], []>} : vector<8x8xf32>, vector<8x128xf32>, vector<8x128xf32> -> vector<8x128xf32>
    %cst_28 = arith.constant dense<0.000000e+00> : vector<8x128xf32>
    %42 = tpu.matmul %38, %40, %cst_28 {dimension_numbers = #tpu.dot_dimension_numbers<[1], [0], [0], [1], [0, 0, 1, 1], [], []>} : vector<8x8xf32>, vector<8x128xf32>, vector<8x128xf32> -> vector<8x128xf32>
    %43 = arith.addf %41, %42 : vector<8x128xf32>
    %44 = vector.broadcast %4 : vector<1x128xf32> to vector<8x128xf32>
    %45 = arith.addf %43, %44 : vector<8x128xf32>
    %cst_29 = arith.constant 0.000000e+00 : f32
    %46 = vector.broadcast %cst_29 : f32 to vector<8x128xf32>
    %47 = arith.maximumf %45, %46 : vector<8x128xf32>
    %c0_30 = arith.constant 0 : index
    %c0_31 = arith.constant 0 : index
    %48 = vector.load %arg11[%c0_30, %c0_31] : memref<8x128xf32, #tpu.memory_space<vmem>>, vector<8x128xf32>
    tpu.vector_store %arg11[%c0_30, %c0_31], %47 {strides = array<i32>} : memref<8x128xf32, #tpu.memory_space<vmem>>, vector<8x128xf32>,
    %49 = vector.extract_strided_slice %2 {offsets = [2, 0], sizes = [1, 128], strides = [1, 1]} : vector<3x128xf32> to vector<1x128xf32>
    %c0_32 = arith.constant 0 : index
    %c0_33 = arith.constant 0 : index
    %50 = vector.load %arg8[%c0_32, %c0_33] : memref<16x128xf32, #tpu.memory_space<vmem>>, vector<8x128xf32>
    %c8_34 = arith.constant 8 : index
    %c0_35 = arith.constant 0 : index
    %51 = vector.load %arg8[%c8_34, %c0_35] : memref<16x128xf32, #tpu.memory_space<vmem>>, vector<8x128xf32>
    %52 = vector.extract_strided_slice %47 {offsets = [0, 0], sizes = [8, 8], strides = [1, 1]} : vector<8x128xf32> to vector<8x8xf32>
    %cst_36 = arith.constant dense<0.000000e+00> : vector<8xf32>
    %53 = vector.multi_reduction <add>, %52, %cst_36 [0] : vector<8x8xf32> to vector<8xf32>
    %54 = vector.shape_cast %53 : vector<8xf32> to vector<1x8xf32>
    %cst_37 = arith.constant 8.000000e+00 : f32
    %55 = vector.broadcast %cst_37 : f32 to vector<1x8xf32>
    %56 = arith.divf %54, %55 : vector<1x8xf32>
    %cst_38 = arith.constant dense<0.000000e+00> : vector<8xf32>
    %57 = vector.multi_reduction <add>, %31, %cst_38 [0] : vector<16x8xf32> to vector<8xf32>
    %58 = vector.shape_cast %57 : vector<8xf32> to vector<1x8xf32>
    %cst_39 = arith.constant 1.600000e+01 : f32
    %59 = vector.broadcast %cst_39 : f32 to vector<1x8xf32>
    %60 = arith.divf %58, %59 : vector<1x8xf32>
    %cst_40 = arith.constant dense<0.000000e+00> : vector<1x128xf32>
    %61 = tpu.matmul %56, %50, %cst_40 {dimension_numbers = #tpu.dot_dimension_numbers<[1], [0], [0], [1], [0, 0, 1, 1], [], []>} : vector<1x8xf32>, vector<8x128xf32>, vector<1x128xf32> -> vector<1x128xf32>
    %cst_41 = arith.constant dense<0.000000e+00> : vector<1x128xf32>
    %62 = tpu.matmul %60, %51, %cst_41 {dimension_numbers = #tpu.dot_dimension_numbers<[1], [0], [0], [1], [0, 0, 1, 1], [], []>} : vector<1x8xf32>, vector<8x128xf32>, vector<1x128xf32> -> vector<1x128xf32>
    %63 = arith.addf %61, %62 : vector<1x128xf32>
    %64 = arith.addf %63, %49 : vector<1x128xf32>
    %c0_42 = arith.constant 0 : index
    %c0_43 = arith.constant 0 : index
    %65 = vector.load %arg12[%c0_42, %c0_43] : memref<1x128xf32, #tpu.memory_space<vmem>>, vector<1x128xf32>
    tpu.vector_store %arg12[%c0_42, %c0_43], %64 {strides = array<i32>} : memref<1x128xf32, #tpu.memory_space<vmem>>, vector<1x128xf32>,
    return
  }
  func.func @transform_0(%arg0: i32) -> (i32, i32) {
    %c0_i32 = arith.constant 0 : i32
    %c0_i32_0 = arith.constant 0 : i32
    %c0_i32_1 = arith.constant 0 : i32
    return %c0_i32, %c0_i32_0 : i32, i32
  }
  func.func @transform_1(%arg0: i32) -> (i32, i32) {
    %c0_i32 = arith.constant 0 : i32
    %c0_i32_0 = arith.constant 0 : i32
    %c0_i32_1 = arith.constant 0 : i32
    return %c0_i32, %c0_i32_0 : i32, i32
  }
  func.func @transform_2(%arg0: i32) -> (i32, i32) {
    %c0_i32 = arith.constant 0 : i32
    %c0_i32_0 = arith.constant 0 : i32
    %c0_i32_1 = arith.constant 0 : i32
    return %c0_i32, %c0_i32_0 : i32, i32
  }
  func.func @transform_3(%arg0: i32) -> (i32, i32) {
    %c0_i32 = arith.constant 0 : i32
    %c0_i32_0 = arith.constant 0 : i32
    %c0_i32_1 = arith.constant 0 : i32
    return %c0_i32, %c0_i32_0 : i32, i32
  }
  func.func @transform_4(%arg0: i32) -> (i32, i32) {
    %c0_i32 = arith.constant 0 : i32
    %c0_i32_0 = arith.constant 0 : i32
    %c0_i32_1 = arith.constant 0 : i32
    return %c0_i32, %c0_i32_0 : i32, i32
  }
  func.func @transform_5(%arg0: i32) -> (i32, i32) {
    %c0_i32 = arith.constant 0 : i32
    %c0_i32_0 = arith.constant 0 : i32
    %c0_i32_1 = arith.constant 0 : i32
    return %c0_i32, %c0_i32_0 : i32, i32
  }
  func.func @transform_6(%arg0: i32) -> (i32, i32) {
    %c0_i32 = arith.constant 0 : i32
    %c0_i32_0 = arith.constant 0 : i32
    %c0_i32_1 = arith.constant 0 : i32
    return %c0_i32, %c0_i32_0 : i32, i32
  }
  func.func @transform_7(%arg0: i32) -> (i32, i32) {
    %c0_i32 = arith.constant 0 : i32
    %c0_i32_0 = arith.constant 0 : i32
    %c0_i32_1 = arith.constant 0 : i32
    return %c0_i32, %c0_i32_0 : i32, i32
  }
  func.func @transform_8(%arg0: i32) -> (i32, i32) {
    %c0_i32 = arith.constant 0 : i32
    %c0_i32_0 = arith.constant 0 : i32
    %c0_i32_1 = arith.constant 0 : i32
    return %c0_i32, %c0_i32_0 : i32, i32
  }
  func.func @transform_9(%arg0: i32) -> (i32, i32) {
    %c0_i32 = arith.constant 0 : i32
    %c0_i32_0 = arith.constant 0 : i32
    %c0_i32_1 = arith.constant 0 : i32
    return %c0_i32, %c0_i32_0 : i32, i32
  }
  func.func @transform_10(%arg0: i32) -> (i32, i32) {
    %c0_i32 = arith.constant 0 : i32
    %c0_i32_0 = arith.constant 0 : i32
    %c0_i32_1 = arith.constant 0 : i32
    return %c0_i32, %c0_i32_0 : i32, i32
  }
  func.func @transform_11(%arg0: i32) -> (i32, i32) {
    %c0_i32 = arith.constant 0 : i32
    %c0_i32_0 = arith.constant 0 : i32
    %c0_i32_1 = arith.constant 0 : i32
    return %c0_i32, %c0_i32_0 : i32, i32
  }
}

</mosaic_0001>

<llo_original>
// kernel: tpu_custom_call.1
$region0: #{tpu_custom_call.1}
  #allocation0 [shape = 'u32[]', space=smem, size = 0x4, offset = 0x4, fixed_abs, tag = 'smem constant byte address 0x4 - core index']
  #allocation1 [shape = 'u32[144,128]{1,0:T(1,128)}', space=vmem, size = 0x12000, scoped, tag = 'internal scratch']
  %s0 = inlined_call_operand.vmem [shape: s32[16,1], index: 0, kind: input, shape index: {}]
  %s1 = inlined_call_operand.vmem [shape: s32[16,1], index: 1, kind: input, shape index: {}]
  %s2 = inlined_call_operand.vmem [shape: s32[1,16], index: 2, kind: input, shape index: {}]
  %s3 = inlined_call_operand.hbm [shape: f32[8,8], index: 3, kind: input, shape index: {}]
  %s4 = inlined_call_operand.vmem [shape: f32[16,8], index: 4, kind: input, shape index: {}]
  %s5 = inlined_call_operand.vmem [shape: f32[24,128], index: 5, kind: input, shape index: {}]
  %s6 = inlined_call_operand.vmem [shape: f32[16,128], index: 6, kind: input, shape index: {}]
  %s7 = inlined_call_operand.vmem [shape: f32[16,128], index: 7, kind: input, shape index: {}]
  %s8 = inlined_call_operand.vmem [shape: f32[3,128], index: 8, kind: input, shape index: {}]
  %s9 = inlined_call_operand.hbm [shape: f32[16,128], index: 9, kind: output, shape index: {0}]
  %s10 = inlined_call_operand.hbm [shape: f32[8,128], index: 10, kind: output, shape index: {1}]
  %s11 = inlined_call_operand.hbm [shape: f32[1,128], index: 11, kind: output, shape index: {2}]
  %12 = xla_tuple %s9, %s10, %s11
  %s13 = sld [smem:[#allocation0]]
  $region66: #{tpu_custom_call.1} parent=0
    _
  %s15 = ssub.s32 1, %s13
  %s16 = scalar_select 0, %s15, %s13
  $region1: #{tpu_custom_call.1} parent=0
    #allocation2 [shape = 'u8[4096]{0}', space=vmem, size = 0x1000, scoped, tag = 'input window, operand 3, single buffered']
    #allocation3 [shape = 's32[1]{0}', space=sflag, size = 0x4, scoped, tag = 'scoped memory for tpu_custom_call.1']
    #allocation4 [shape = 's32[1]{0}', space=sflag, size = 0x4, scoped, tag = 'scoped memory for tpu_custom_call.1']
    #allocation5 [shape = 'u8[8192]{0}', space=vmem, size = 0x2000, scoped, tag = 'output window, operand 0, single buffered']
    #allocation6 [shape = 'u8[4096]{0}', space=vmem, size = 0x1000, scoped, tag = 'output window, operand 1, single buffered']
    #allocation7 [shape = 's32[1]{0}', space=sflag, size = 0x4, scoped, tag = 'scoped memory for tpu_custom_call.1']
    #allocation8 [shape = 'u8[512]{0}', space=vmem, size = 0x400, scoped, tag = 'output window, operand 2, single buffered']
    %17 = vsyncpa [#allocation3], 0
    %18 = vsyncpa [#allocation4], 0
    %19 = vsyncpa [#allocation7], 0
    // Predicated region
    $region2: #{tpu_custom_call.1} parent=1 // pred_check
      _
    $region3: #{tpu_custom_call.1} parent=1 // pred_check_branch
      %21 = sbr.rel (0) target = $region5
    $region4: #{tpu_custom_call.1} parent=1 // pred_region
      _
    $region5: #{tpu_custom_call.1} parent=1 // pred_fallthru
      _
    // Predicated region
    $region6: #{tpu_custom_call.1} parent=1 // pred_check
      _
    $region7: #{tpu_custom_call.1} parent=1 // pred_check_branch
      %23 = sbr.rel (0) target = $region9
    $region8: #{tpu_custom_call.1} parent=1 // pred_region
      _
    $region9: #{tpu_custom_call.1} parent=1 // pred_fallthru
      _
    // Predicated region
    $region10: #{tpu_custom_call.1} parent=1 // pred_check
      _
    $region11: #{tpu_custom_call.1} parent=1 // pred_check_branch
      %25 = sbr.rel (0) target = $region13
    $region12: #{tpu_custom_call.1} parent=1 // pred_region
      _
    $region13: #{tpu_custom_call.1} parent=1 // pred_fallthru
      _
    // Predicated region
    $region14: #{tpu_custom_call.1} parent=1 // pred_check
      _
    $region15: #{tpu_custom_call.1} parent=1 // pred_check_branch
      %27 = sbr.rel (0) target = $region17
    $region16: #{tpu_custom_call.1} parent=1 // pred_region
      %s29 = ssub.s32 128, 128
      %30 = vsyncadd [#allocation3], %s29
      %s32 = sshll.u32 [#allocation2], 4
      %s33 = int_to_ptr.vmem [resolvable:$true] %s32
      %35 = dma.hbm_to_vmem [thread:$0]  %s3, 128, %s33, [#allocation3]
    $region17: #{tpu_custom_call.1} parent=1 // pred_fallthru
      _
    // Predicated region
    $region18: #{tpu_custom_call.1} parent=1 // pred_check
      _
    $region19: #{tpu_custom_call.1} parent=1 // pred_check_branch
      %37 = sbr.rel (0) target = $region21
    $region20: #{tpu_custom_call.1} parent=1 // pred_region
      _
    $region21: #{tpu_custom_call.1} parent=1 // pred_fallthru
      _
    // Predicated region
    $region22: #{tpu_custom_call.1} parent=1 // pred_check
      _
    $region23: #{tpu_custom_call.1} parent=1 // pred_check_branch
      %39 = sbr.rel (0) target = $region25
    $region24: #{tpu_custom_call.1} parent=1 // pred_region
      _
    $region25: #{tpu_custom_call.1} parent=1 // pred_fallthru
      _
    // Predicated region
    $region26: #{tpu_custom_call.1} parent=1 // pred_check
      _
    $region27: #{tpu_custom_call.1} parent=1 // pred_check_branch
      %41 = sbr.rel (0) target = $region29
    $region28: #{tpu_custom_call.1} parent=1 // pred_region
      _
    $region29: #{tpu_custom_call.1} parent=1 // pred_fallthru
      _
    // Predicated region
    $region30: #{tpu_custom_call.1} parent=1 // pred_check
      _
    $region31: #{tpu_custom_call.1} parent=1 // pred_check_branch
      %43 = sbr.rel (0) target = $region33
    $region32: #{tpu_custom_call.1} parent=1 // pred_region
      _
    $region33: #{tpu_custom_call.1} parent=1 // pred_fallthru
      _
    // Predicated region
    $region34: #{tpu_custom_call.1} parent=1 // pred_check
      _
    $region35: #{tpu_custom_call.1} parent=1 // pred_check_branch
      %45 = sbr.rel (0) target = $region37
    $region36: #{tpu_custom_call.1} parent=1 // pred_region
      _
    $region37: #{tpu_custom_call.1} parent=1 // pred_fallthru
      _
    // Predicated region
    $region38: #{tpu_custom_call.1} parent=1 // pred_check
      _
    $region39: #{tpu_custom_call.1} parent=1 // pred_check_branch
      %47 = sbr.rel (0) target = $region41
    $region40: #{tpu_custom_call.1} parent=1 // pred_region
      %48 = dma.done [#allocation3], 128
    $region41: #{tpu_custom_call.1} parent=1 // pred_fallthru
      _
    %v49 = vld [vmem:[#allocation2] sm:$0xff]
    %v50 = vld [vmem:[%s4] sm:$0xff]
    %v51 = vld [vmem:[%s4 + $0x8] sm:$0xff]
    %v52 = vld [vmem:[%s8] sm:$0x7]
    %v53 = vld [vmem:[%s5] sm:$0xff]
    %v54 = vld [vmem:[%s5 + $0x8] sm:$0xff]
    %v55 = vld [vmem:[%s5 + $0x10] sm:$0xff]
    %vm56 = vcmask 64512
    %v58 = vsel %vm56, %v49, 0
    %60 = vmatprep.subr.mxu0 0.0
    %61 = vmatpush1.msra.mxu0 %v54
    %62 = vmatprep.subr.mxu0 0.0
    %63 = vmatpush1.msra.mxu0 0.0
    %64 = vmatprep.subr.mxu0 0.0
    %65 = vmatpush1.msra.mxu0 0.0
    %66 = vmatprep.subr.mxu0 0.0
    %67 = vmatpush1.msra.mxu0 0.0
    %68 = vmatprep.subr.mxu0 0.0
    %69 = vmatpush1.msra.mxu0 0.0
    %70 = vmatprep.subr.mxu0 0.0
    %71 = vmatpush1.msra.mxu0 0.0
    %72 = vmatprep.subr.mxu0 0.0
    %73 = vmatpush1.msra.mxu0 0.0
    %74 = vmatprep.subr.mxu0 0.0
    %75 = vmatpush1.msra.mxu0 0.0
    %76 = vmatprep.subr.mxu0 0.0
    %77 = vmatpush1.msra.mxu0 0.0
    %78 = vmatprep.subr.mxu0 0.0
    %79 = vmatpush1.msra.mxu0 0.0
    %80 = vmatprep.subr.mxu0 0.0
    %81 = vmatpush1.msra.mxu0 0.0
    %82 = vmatprep.subr.mxu0 0.0
    %83 = vmatpush1.msra.mxu0 0.0
    %84 = vmatprep.subr.mxu0 0.0
    %85 = vmatpush1.msra.mxu0 0.0
    %86 = vmatprep.subr.mxu0 0.0
    %87 = vmatpush1.msra.mxu0 0.0
    %88 = vmatprep.subr.mxu0 0.0
    %89 = vmatpush1.msra.mxu0 0.0
    %90 = vmatprep.subr.mxu0 0.0
    %91 = vmatpush1.msra.mxu0 0.0
    %92 = vmatprep.subr.mxu0 0.0
    %93 = vmatpush1.msra.mxu0 0.0
    %94 = vmatprep.subr.mxu0 0.0
    %95 = vmatpush1.msra.mxu0 0.0
    %96 = vmatprep.subr.mxu0 0.0
    %97 = vmatpush1.msra.mxu0 0.0
    %98 = vmatprep.subr.mxu0 0.0
    %99 = vmatpush1.msra.mxu0 0.0
    %100 = vmatprep.subr.mxu0 0.0
    %101 = vmatpush1.msra.mxu0 0.0
    %102 = vmatprep.subr.mxu0 0.0
    %103 = vmatpush1.msra.mxu0 0.0
    %104 = vmatprep.subr.mxu0 0.0
    %105 = vmatpush1.msra.mxu0 0.0
    %106 = vmatprep.subr.mxu0 0.0
    %107 = vmatpush1.msra.mxu0 0.0
    %108 = vmatprep.subr.mxu0 0.0
    %109 = vmatpush1.msra.mxu0 0.0
    %110 = vmatprep.subr.mxu0 0.0
    %111 = vmatpush1.msra.mxu0 0.0
    %112 = vmatprep.subr.mxu0 0.0
    %113 = vmatpush1.msra.mxu0 0.0
    %114 = vmatprep.subr.mxu0 0.0
    %115 = vmatpush1.msra.mxu0 0.0
    %116 = vmatprep.subr.mxu0 0.0
    %117 = vmatpush1.msra.mxu0 0.0
    %118 = vmatprep.subr.mxu0 0.0
    %119 = vmatpush1.msra.mxu0 0.0
    %120 = vmatprep.subr.mxu0 0.0
    %121 = vmatpush1.msra.mxu0 0.0
    %122 = vmatprep.subr.mxu0 0.0
    %123 = vmatpush1.msra.mxu0 0.0
    %124 = vmatprep.mubr.f32.mxu0 0.0
    %125 = vmatmul.mubr.f32.gmra.mrb[0].mxu0 %v58
    %v126 = vpop.f32.mrb[0].mxu0
    %v127 = vadd.f32 0.0, %v126
    %v128 = vpop.f32.mrb[0].mxu0
    %129 = vdwg.mxu0
    %130 = vmatprep.subr.mxu0 0.0
    %131 = vmatpush1.msra.mxu0 %v55
    %132 = vmatprep.subr.mxu0 0.0
    %133 = vmatpush1.msra.mxu0 0.0
    %134 = vmatprep.subr.mxu0 0.0
    %135 = vmatpush1.msra.mxu0 0.0
    %136 = vmatprep.subr.mxu0 0.0
    %137 = vmatpush1.msra.mxu0 0.0
    %138 = vmatprep.subr.mxu0 0.0
    %139 = vmatpush1.msra.mxu0 0.0
    %140 = vmatprep.subr.mxu0 0.0
    %141 = vmatpush1.msra.mxu0 0.0
    %142 = vmatprep.subr.mxu0 0.0
    %143 = vmatpush1.msra.mxu0 0.0
    %144 = vmatprep.subr.mxu0 0.0
    %145 = vmatpush1.msra.mxu0 0.0
    %146 = vmatprep.subr.mxu0 0.0
    %147 = vmatpush1.msra.mxu0 0.0
    %148 = vmatprep.subr.mxu0 0.0
    %149 = vmatpush1.msra.mxu0 0.0
    %150 = vmatprep.subr.mxu0 0.0
    %151 = vmatpush1.msra.mxu0 0.0
    %152 = vmatprep.subr.mxu0 0.0
    %153 = vmatpush1.msra.mxu0 0.0
    %154 = vmatprep.subr.mxu0 0.0
    %155 = vmatpush1.msra.mxu0 0.0
    %156 = vmatprep.subr.mxu0 0.0
    %157 = vmatpush1.msra.mxu0 0.0
    %158 = vmatprep.subr.mxu0 0.0
    %159 = vmatpush1.msra.mxu0 0.0
    %160 = vmatprep.subr.mxu0 0.0
    %161 = vmatpush1.msra.mxu0 0.0
    %162 = vmatprep.subr.mxu0 0.0
    %163 = vmatpush1.msra.mxu0 0.0
    %164 = vmatprep.subr.mxu0 0.0
    %165 = vmatpush1.msra.mxu0 0.0
    %166 = vmatprep.subr.mxu0 0.0
    %167 = vmatpush1.msra.mxu0 0.0
    %168 = vmatprep.subr.mxu0 0.0
    %169 = vmatpush1.msra.mxu0 0.0
    %170 = vmatprep.subr.mxu0 0.0
    %171 = vmatpush1.msra.mxu0 0.0
    %172 = vmatprep.subr.mxu0 0.0
    %173 = vmatpush1.msra.mxu0 0.0
    %174 = vmatprep.subr.mxu0 0.0
    %175 = vmatpush1.msra.mxu0 0.0
    %176 = vmatprep.subr.mxu0 0.0
    %177 = vmatpush1.msra.mxu0 0.0
    %178 = vmatprep.subr.mxu0 0.0
    %179 = vmatpush1.msra.mxu0 0.0
    %180 = vmatprep.subr.mxu0 0.0
    %181 = vmatpush1.msra.mxu0 0.0
    %182 = vmatprep.subr.mxu0 0.0
    %183 = vmatpush1.msra.mxu0 0.0
    %184 = vmatprep.subr.mxu0 0.0
    %185 = vmatpush1.msra.mxu0 0.0
    %186 = vmatprep.subr.mxu0 0.0
    %187 = vmatpush1.msra.mxu0 0.0
    %188 = vmatprep.subr.mxu0 0.0
    %189 = vmatpush1.msra.mxu0 0.0
    %190 = vmatprep.subr.mxu0 0.0
    %191 = vmatpush1.msra.mxu0 0.0
    %192 = vmatprep.subr.mxu0 0.0
    %193 = vmatpush1.msra.mxu0 0.0
    %194 = vmatprep.mubr.f32.mxu0 0.0
    %195 = vmatmul.mubr.f32.gmra.mrb[0].mxu0 %v58
    %v196 = vpop.f32.mrb[0].mxu0
    %v197 = vadd.f32 0.0, %v196
    %v198 = vpop.f32.mrb[0].mxu0
    %199 = vdwg.mxu0
    %v200 = vlaneseq
    %v201 = vand.u32 %v200, 127
    %v202 = vld [vmem:[%s0] sm:$0xff]
    %v203 = vld [vmem:[%s0 + $0x8] sm:$0xff]
    %204 = vset.pattern.permute.xlu0 0
    %205 = vperm.xlu0 %204, %v202
    %v206 = vpop.permute.xlu0 %205
    %207 = vset.pattern.permute.xlu0 0
    %208 = vperm.xlu0 %207, %v203
    %v209 = vpop.permute.xlu0 %208
    %vm210 = vcmp.eq.s32.totalorder %v201, %v206
    %vm211 = vcmp.eq.s32.totalorder %v201, %v209
    %v212 = vsel %vm210, 1, 0
    %v213 = vsel %vm211, 1, 0
    %v214 = vcvt.s32.f32 %v212
    %v215 = vcvt.s32.f32 %v213
    %v216 = vld [vmem:[%s1] sm:$0xff]
    %v217 = vld [vmem:[%s1 + $0x8] sm:$0xff]
    %218 = vset.pattern.permute.xlu0 0
    %219 = vperm.xlu0 %218, %v216
    %v220 = vpop.permute.xlu0 %219
    %221 = vset.pattern.permute.xlu0 0
    %222 = vperm.xlu0 %221, %v217
    %v223 = vpop.permute.xlu0 %222
    %vm224 = vcmp.eq.s32.totalorder %v201, %v220
    %vm225 = vcmp.eq.s32.totalorder %v201, %v223
    %v226 = vsel %vm224, 1, 0
    %v227 = vsel %vm225, 1, 0
    %v228 = vcvt.s32.f32 %v226
    %v229 = vcvt.s32.f32 %v227
    %v231 = vsel %vm56, %v214, 0
    %v234 = vsel %vm56, %v215, 0
    %236 = vmatprep.subr.mxu0 0.0
    %237 = vmatpush1.msra.mxu0 %v127
    %238 = vmatprep.subr.mxu0 0.0
    %239 = vmatpush1.msra.mxu0 0.0
    %240 = vmatprep.subr.mxu0 0.0
    %241 = vmatpush1.msra.mxu0 0.0
    %242 = vmatprep.subr.mxu0 0.0
    %243 = vmatpush1.msra.mxu0 0.0
    %244 = vmatprep.subr.mxu0 0.0
    %245 = vmatpush1.msra.mxu0 0.0
    %246 = vmatprep.subr.mxu0 0.0
    %247 = vmatpush1.msra.mxu0 0.0
    %248 = vmatprep.subr.mxu0 0.0
    %249 = vmatpush1.msra.mxu0 0.0
    %250 = vmatprep.subr.mxu0 0.0
    %251 = vmatpush1.msra.mxu0 0.0
    %252 = vmatprep.subr.mxu0 0.0
    %253 = vmatpush1.msra.mxu0 0.0
    %254 = vmatprep.subr.mxu0 0.0
    %255 = vmatpush1.msra.mxu0 0.0
    %256 = vmatprep.subr.mxu0 0.0
    %257 = vmatpush1.msra.mxu0 0.0
    %258 = vmatprep.subr.mxu0 0.0
    %259 = vmatpush1.msra.mxu0 0.0
    %260 = vmatprep.subr.mxu0 0.0
    %261 = vmatpush1.msra.mxu0 0.0
    %262 = vmatprep.subr.mxu0 0.0
    %263 = vmatpush1.msra.mxu0 0.0
    %264 = vmatprep.subr.mxu0 0.0
    %265 = vmatpush1.msra.mxu0 0.0
    %266 = vmatprep.subr.mxu0 0.0
    %267 = vmatpush1.msra.mxu0 0.0
    %268 = vmatprep.subr.mxu0 0.0
    %269 = vmatpush1.msra.mxu0 0.0
    %270 = vmatprep.subr.mxu0 0.0
    %271 = vmatpush1.msra.mxu0 0.0
    %272 = vmatprep.subr.mxu0 0.0
    %273 = vmatpush1.msra.mxu0 0.0
    %274 = vmatprep.subr.mxu0 0.0
    %275 = vmatpush1.msra.mxu0 0.0
    %276 = vmatprep.subr.mxu0 0.0
    %277 = vmatpush1.msra.mxu0 0.0
    %278 = vmatprep.subr.mxu0 0.0
    %279 = vmatpush1.msra.mxu0 0.0
    %280 = vmatprep.subr.mxu0 0.0
    %281 = vmatpush1.msra.mxu0 0.0
    %282 = vmatprep.subr.mxu0 0.0
    %283 = vmatpush1.msra.mxu0 0.0
    %284 = vmatprep.subr.mxu0 0.0
    %285 = vmatpush1.msra.mxu0 0.0
    %286 = vmatprep.subr.mxu0 0.0
    %287 = vmatpush1.msra.mxu0 0.0
    %288 = vmatprep.subr.mxu0 0.0
    %289 = vmatpush1.msra.mxu0 0.0
    %290 = vmatprep.subr.mxu0 0.0
    %291 = vmatpush1.msra.mxu0 0.0
    %292 = vmatprep.subr.mxu0 0.0
    %293 = vmatpush1.msra.mxu0 0.0
    %294 = vmatprep.subr.mxu0 0.0
    %295 = vmatpush1.msra.mxu0 0.0
    %296 = vmatprep.subr.mxu0 0.0
    %297 = vmatpush1.msra.mxu0 0.0
    %298 = vmatprep.subr.mxu0 0.0
    %299 = vmatpush1.msra.mxu0 0.0
    %300 = vmatprep.mubr.f32.mxu0 0.0
    %301 = vmatmul.mubr.f32.gmra.mrb[0].mxu0 %v231
    %v302 = vpop.f32.mrb[0].mxu0
    %v303 = vadd.f32 0.0, %v302
    %v304 = vpop.f32.mrb[0].mxu0
    %305 = vmatprep.mubr.f32.mxu0 0.0
    %306 = vmatmul.mubr.f32.gmra.mrb[0].mxu0 %v234
    %v307 = vpop.f32.mrb[0].mxu0
    %v308 = vadd.f32 0.0, %v307
    %v309 = vpop.f32.mrb[0].mxu0
    %310 = vdwg.mxu0
    %v312 = vsel %vm56, %v50, 0
    %v315 = vsel %vm56, %v51, 0
    %317 = vmatprep.subr.mxu0 0.0
    %318 = vmatpush1.msra.mxu0 %v53
    %319 = vmatprep.subr.mxu0 0.0
    %320 = vmatpush1.msra.mxu0 0.0
    %321 = vmatprep.subr.mxu0 0.0
    %322 = vmatpush1.msra.mxu0 0.0
    %323 = vmatprep.subr.mxu0 0.0
    %324 = vmatpush1.msra.mxu0 0.0
    %325 = vmatprep.subr.mxu0 0.0
    %326 = vmatpush1.msra.mxu0 0.0
    %327 = vmatprep.subr.mxu0 0.0
    %328 = vmatpush1.msra.mxu0 0.0
    %329 = vmatprep.subr.mxu0 0.0
    %330 = vmatpush1.msra.mxu0 0.0
    %331 = vmatprep.subr.mxu0 0.0
    %332 = vmatpush1.msra.mxu0 0.0
    %333 = vmatprep.subr.mxu0 0.0
    %334 = vmatpush1.msra.mxu0 0.0
    %335 = vmatprep.subr.mxu0 0.0
    %336 = vmatpush1.msra.mxu0 0.0
    %337 = vmatprep.subr.mxu0 0.0
    %338 = vmatpush1.msra.mxu0 0.0
    %339 = vmatprep.subr.mxu0 0.0
    %340 = vmatpush1.msra.mxu0 0.0
    %341 = vmatprep.subr.mxu0 0.0
    %342 = vmatpush1.msra.mxu0 0.0
    %343 = vmatprep.subr.mxu0 0.0
    %344 = vmatpush1.msra.mxu0 0.0
    %345 = vmatprep.subr.mxu0 0.0
    %346 = vmatpush1.msra.mxu0 0.0
    %347 = vmatprep.subr.mxu0 0.0
    %348 = vmatpush1.msra.mxu0 0.0
    %349 = vmatprep.subr.mxu0 0.0
    %350 = vmatpush1.msra.mxu0 0.0
    %351 = vmatprep.subr.mxu0 0.0
    %352 = vmatpush1.msra.mxu0 0.0
    %353 = vmatprep.subr.mxu0 0.0
    %354 = vmatpush1.msra.mxu0 0.0
    %355 = vmatprep.subr.mxu0 0.0
    %356 = vmatpush1.msra.mxu0 0.0
    %357 = vmatprep.subr.mxu0 0.0
    %358 = vmatpush1.msra.mxu0 0.0
    %359 = vmatprep.subr.mxu0 0.0
    %360 = vmatpush1.msra.mxu0 0.0
    %361 = vmatprep.subr.mxu0 0.0
    %362 = vmatpush1.msra.mxu0 0.0
    %363 = vmatprep.subr.mxu0 0.0
    %364 = vmatpush1.msra.mxu0 0.0
    %365 = vmatprep.subr.mxu0 0.0
    %366 = vmatpush1.msra.mxu0 0.0
    %367 = vmatprep.subr.mxu0 0.0
    %368 = vmatpush1.msra.mxu0 0.0
    %369 = vmatprep.subr.mxu0 0.0
    %370 = vmatpush1.msra.mxu0 0.0
    %371 = vmatprep.subr.mxu0 0.0
    %372 = vmatpush1.msra.mxu0 0.0
    %373 = vmatprep.subr.mxu0 0.0
    %374 = vmatpush1.msra.mxu0 0.0
    %375 = vmatprep.subr.mxu0 0.0
    %376 = vmatpush1.msra.mxu0 0.0
    %377 = vmatprep.subr.mxu0 0.0
    %378 = vmatpush1.msra.mxu0 0.0
    %379 = vmatprep.subr.mxu0 0.0
    %380 = vmatpush1.msra.mxu0 0.0
    %381 = vmatprep.mubr.f32.mxu0 0.0
    %382 = vmatmul.mubr.f32.gmra.mrb[0].mxu0 %v312
    %v383 = vpop.f32.mrb[0].mxu0
    %v384 = vadd.f32 %v303, %v383
    %v385 = vpop.f32.mrb[0].mxu0
    %386 = vmatprep.mubr.f32.mxu0 0.0
    %387 = vmatmul.mubr.f32.gmra.mrb[0].mxu0 %v315
    %v388 = vpop.f32.mrb[0].mxu0
    %v389 = vadd.f32 %v308, %v388
    %v390 = vpop.f32.mrb[0].mxu0
    %391 = vdwg.mxu0
    %v393 = vsel %vm56, %v228, 0
    %v396 = vsel %vm56, %v229, 0
    %398 = vmatprep.subr.mxu0 0.0
    %399 = vmatpush1.msra.mxu0 %v197
    %400 = vmatprep.subr.mxu0 0.0
    %401 = vmatpush1.msra.mxu0 0.0
    %402 = vmatprep.subr.mxu0 0.0
    %403 = vmatpush1.msra.mxu0 0.0
    %404 = vmatprep.subr.mxu0 0.0
    %405 = vmatpush1.msra.mxu0 0.0
    %406 = vmatprep.subr.mxu0 0.0
    %407 = vmatpush1.msra.mxu0 0.0
    %408 = vmatprep.subr.mxu0 0.0
    %409 = vmatpush1.msra.mxu0 0.0
    %410 = vmatprep.subr.mxu0 0.0
    %411 = vmatpush1.msra.mxu0 0.0
    %412 = vmatprep.subr.mxu0 0.0
    %413 = vmatpush1.msra.mxu0 0.0
    %414 = vmatprep.subr.mxu0 0.0
    %415 = vmatpush1.msra.mxu0 0.0
    %416 = vmatprep.subr.mxu0 0.0
    %417 = vmatpush1.msra.mxu0 0.0
    %418 = vmatprep.subr.mxu0 0.0
    %419 = vmatpush1.msra.mxu0 0.0
    %420 = vmatprep.subr.mxu0 0.0
    %421 = vmatpush1.msra.mxu0 0.0
    %422 = vmatprep.subr.mxu0 0.0
    %423 = vmatpush1.msra.mxu0 0.0
    %424 = vmatprep.subr.mxu0 0.0
    %425 = vmatpush1.msra.mxu0 0.0
    %426 = vmatprep.subr.mxu0 0.0
    %427 = vmatpush1.msra.mxu0 0.0
    %428 = vmatprep.subr.mxu0 0.0
    %429 = vmatpush1.msra.mxu0 0.0
    %430 = vmatprep.subr.mxu0 0.0
    %431 = vmatpush1.msra.mxu0 0.0
    %432 = vmatprep.subr.mxu0 0.0
    %433 = vmatpush1.msra.mxu0 0.0
    %434 = vmatprep.subr.mxu0 0.0
    %435 = vmatpush1.msra.mxu0 0.0
    %436 = vmatprep.subr.mxu0 0.0
    %437 = vmatpush1.msra.mxu0 0.0
    %438 = vmatprep.subr.mxu0 0.0
    %439 = vmatpush1.msra.mxu0 0.0
    %440 = vmatprep.subr.mxu0 0.0
    %441 = vmatpush1.msra.mxu0 0.0
    %442 = vmatprep.subr.mxu0 0.0
    %443 = vmatpush1.msra.mxu0 0.0
    %444 = vmatprep.subr.mxu0 0.0
    %445 = vmatpush1.msra.mxu0 0.0
    %446 = vmatprep.subr.mxu0 0.0
    %447 = vmatpush1.msra.mxu0 0.0
    %448 = vmatprep.subr.mxu0 0.0
    %449 = vmatpush1.msra.mxu0 0.0
    %450 = vmatprep.subr.mxu0 0.0
    %451 = vmatpush1.msra.mxu0 0.0
    %452 = vmatprep.subr.mxu0 0.0
    %453 = vmatpush1.msra.mxu0 0.0
    %454 = vmatprep.subr.mxu0 0.0
    %455 = vmatpush1.msra.mxu0 0.0
    %456 = vmatprep.subr.mxu0 0.0
    %457 = vmatpush1.msra.mxu0 0.0
    %458 = vmatprep.subr.mxu0 0.0
    %459 = vmatpush1.msra.mxu0 0.0
    %460 = vmatprep.subr.mxu0 0.0
    %461 = vmatpush1.msra.mxu0 0.0
    %462 = vmatprep.mubr.f32.mxu0 0.0
    %463 = vmatmul.mubr.f32.gmra.mrb[0].mxu0 %v393
    %v464 = vpop.f32.mrb[0].mxu0
    %v465 = vadd.f32 0.0, %v464
    %v466 = vpop.f32.mrb[0].mxu0
    %467 = vmatprep.mubr.f32.mxu0 0.0
    %468 = vmatmul.mubr.f32.gmra.mrb[0].mxu0 %v396
    %v469 = vpop.f32.mrb[0].mxu0
    %v470 = vadd.f32 0.0, %v469
    %v471 = vpop.f32.mrb[0].mxu0
    %472 = vdwg.mxu0
    %v473 = vadd.f32 %v384, %v465
    %v474 = vadd.f32 %v389, %v470
    %v475 = vlaneseq
    %v476 = vshrl.u32 %v475, 7
    %v477 = vsub.s32 0, %v476
    %v478 = vrot.slane %v52, %v477
    %v479 = vadd.f32 %v473, %v478
    %v480 = vadd.f32 %v474, %v478
    %v481 = vmax.f32 %v479, 0.0
    %v482 = vmax.f32 %v480, 0.0
    %483 = vst [vmem:[#allocation5] sm:$0xff] %v481
    %484 = vst [vmem:[#allocation5 + $0x8] sm:$0xff] %v482
    %v485 = vlaneseq
    %v486 = vshrl.u32 %v485, 7
    %v487 = vld [vmem:[%s2] sm:$0x1]
    %v488 = vlaneseq
    %v489 = vshrl.u32 %v488, 7
    %v490 = vsub.s32 0, %v489
    %v491 = vrot.slane %v487, %v490
    %vm492 = vcmp.eq.s32.totalorder %v486, %v491
    %v493 = vsel %vm492, 1, 0
    %v494 = vcvt.s32.f32 %v493
    %vm495 = vcmask 130048
    %v497 = vsel %vm495, %v494, 0
    %499 = vmatprep.subr.mxu0 0.0
    %500 = vmatpush1.msra.mxu0 %v481
    %501 = vmatprep.subr.mxu0 0.0
    %502 = vmatpush1.msra.mxu0 %v482
    %503 = vmatprep.subr.mxu0 0.0
    %504 = vmatpush1.msra.mxu0 0.0
    %505 = vmatprep.subr.mxu0 0.0
    %506 = vmatpush1.msra.mxu0 0.0
    %507 = vmatprep.subr.mxu0 0.0
    %508 = vmatpush1.msra.mxu0 0.0
    %509 = vmatprep.subr.mxu0 0.0
    %510 = vmatpush1.msra.mxu0 0.0
    %511 = vmatprep.subr.mxu0 0.0
    %512 = vmatpush1.msra.mxu0 0.0
    %513 = vmatprep.subr.mxu0 0.0
    %514 = vmatpush1.msra.mxu0 0.0
    %515 = vmatprep.subr.mxu0 0.0
    %516 = vmatpush1.msra.mxu0 0.0
    %517 = vmatprep.subr.mxu0 0.0
    %518 = vmatpush1.msra.mxu0 0.0
    %519 = vmatprep.subr.mxu0 0.0
    %520 = vmatpush1.msra.mxu0 0.0
    %521 = vmatprep.subr.mxu0 0.0
    %522 = vmatpush1.msra.mxu0 0.0
    %523 = vmatprep.subr.mxu0 0.0
    %524 = vmatpush1.msra.mxu0 0.0
    %525 = vmatprep.subr.mxu0 0.0
    %526 = vmatpush1.msra.mxu0 0.0
    %527 = vmatprep.subr.mxu0 0.0
    %528 = vmatpush1.msra.mxu0 0.0
    %529 = vmatprep.subr.mxu0 0.0
    %530 = vmatpush1.msra.mxu0 0.0
    %531 = vmatprep.subr.mxu0 0.0
    %532 = vmatpush1.msra.mxu0 0.0
    %533 = vmatprep.subr.mxu0 0.0
    %534 = vmatpush1.msra.mxu0 0.0
    %535 = vmatprep.subr.mxu0 0.0
    %536 = vmatpush1.msra.mxu0 0.0
    %537 = vmatprep.subr.mxu0 0.0
    %538 = vmatpush1.msra.mxu0 0.0
    %539 = vmatprep.subr.mxu0 0.0
    %540 = vmatpush1.msra.mxu0 0.0
    %541 = vmatprep.subr.mxu0 0.0
    %542 = vmatpush1.msra.mxu0 0.0
    %543 = vmatprep.subr.mxu0 0.0
    %544 = vmatpush1.msra.mxu0 0.0
    %545 = vmatprep.subr.mxu0 0.0
    %546 = vmatpush1.msra.mxu0 0.0
    %547 = vmatprep.subr.mxu0 0.0
    %548 = vmatpush1.msra.mxu0 0.0
    %549 = vmatprep.subr.mxu0 0.0
    %550 = vmatpush1.msra.mxu0 0.0
    %551 = vmatprep.subr.mxu0 0.0
    %552 = vmatpush1.msra.mxu0 0.0
    %553 = vmatprep.subr.mxu0 0.0
    %554 = vmatpush1.msra.mxu0 0.0
    %555 = vmatprep.subr.mxu0 0.0
    %556 = vmatpush1.msra.mxu0 0.0
    %557 = vmatprep.subr.mxu0 0.0
    %558 = vmatpush1.msra.mxu0 0.0
    %559 = vmatprep.subr.mxu0 0.0
    %560 = vmatpush1.msra.mxu0 0.0
    %561 = vmatprep.subr.mxu0 0.0
    %562 = vmatpush1.msra.mxu0 0.0
    %563 = vmatprep.mubr.f32.mxu0 0.0
    %564 = vmatmul.mubr.f32.gmra.mrb[0].mxu0 %v497
    %v565 = vpop.f32.mrb[0].mxu0
    %v566 = vadd.f32 0.0, %v565
    %v567 = vpop.f32.mrb[0].mxu0
    %568 = vdwg.mxu0
    %v569 = vld [vmem:[%s6] sm:$0xff]
    %v570 = vld [vmem:[%s6 + $0x8] sm:$0xff]
    %v572 = vsel %vm56, %v566, 0
    %574 = vmatprep.subr.mxu0 0.0
    %575 = vmatpush1.msra.mxu0 %v570
    %576 = vmatprep.subr.mxu0 0.0
    %577 = vmatpush1.msra.mxu0 0.0
    %578 = vmatprep.subr.mxu0 0.0
    %579 = vmatpush1.msra.mxu0 0.0
    %580 = vmatprep.subr.mxu0 0.0
    %581 = vmatpush1.msra.mxu0 0.0
    %582 = vmatprep.subr.mxu0 0.0
    %583 = vmatpush1.msra.mxu0 0.0
    %584 = vmatprep.subr.mxu0 0.0
    %585 = vmatpush1.msra.mxu0 0.0
    %586 = vmatprep.subr.mxu0 0.0
    %587 = vmatpush1.msra.mxu0 0.0
    %588 = vmatprep.subr.mxu0 0.0
    %589 = vmatpush1.msra.mxu0 0.0
    %590 = vmatprep.subr.mxu0 0.0
    %591 = vmatpush1.msra.mxu0 0.0
    %592 = vmatprep.subr.mxu0 0.0
    %593 = vmatpush1.msra.mxu0 0.0
    %594 = vmatprep.subr.mxu0 0.0
    %595 = vmatpush1.msra.mxu0 0.0
    %596 = vmatprep.subr.mxu0 0.0
    %597 = vmatpush1.msra.mxu0 0.0
    %598 = vmatprep.subr.mxu0 0.0
    %599 = vmatpush1.msra.mxu0 0.0
    %600 = vmatprep.subr.mxu0 0.0
    %601 = vmatpush1.msra.mxu0 0.0
    %602 = vmatprep.subr.mxu0 0.0
    %603 = vmatpush1.msra.mxu0 0.0
    %604 = vmatprep.subr.mxu0 0.0
    %605 = vmatpush1.msra.mxu0 0.0
    %606 = vmatprep.subr.mxu0 0.0
    %607 = vmatpush1.msra.mxu0 0.0
    %608 = vmatprep.subr.mxu0 0.0
    %609 = vmatpush1.msra.mxu0 0.0
    %610 = vmatprep.subr.mxu0 0.0
    %611 = vmatpush1.msra.mxu0 0.0
    %612 = vmatprep.subr.mxu0 0.0
    %613 = vmatpush1.msra.mxu0 0.0
    %614 = vmatprep.subr.mxu0 0.0
    %615 = vmatpush1.msra.mxu0 0.0
    %616 = vmatprep.subr.mxu0 0.0
    %617 = vmatpush1.msra.mxu0 0.0
    %618 = vmatprep.subr.mxu0 0.0
    %619 = vmatpush1.msra.mxu0 0.0
    %620 = vmatprep.subr.mxu0 0.0
    %621 = vmatpush1.msra.mxu0 0.0
    %622 = vmatprep.subr.mxu0 0.0
    %623 = vmatpush1.msra.mxu0 0.0
    %624 = vmatprep.subr.mxu0 0.0
    %625 = vmatpush1.msra.mxu0 0.0
    %626 = vmatprep.subr.mxu0 0.0
    %627 = vmatpush1.msra.mxu0 0.0
    %628 = vmatprep.subr.mxu0 0.0
    %629 = vmatpush1.msra.mxu0 0.0
    %630 = vmatprep.subr.mxu0 0.0
    %631 = vmatpush1.msra.mxu0 0.0
    %632 = vmatprep.subr.mxu0 0.0
    %633 = vmatpush1.msra.mxu0 0.0
    %634 = vmatprep.subr.mxu0 0.0
    %635 = vmatpush1.msra.mxu0 0.0
    %636 = vmatprep.subr.mxu0 0.0
    %637 = vmatpush1.msra.mxu0 0.0
    %638 = vmatprep.mubr.f32.mxu0 0.0
    %639 = vmatmul.mubr.f32.gmra.mrb[0].mxu0 %v572
    %v640 = vpop.f32.mrb[0].mxu0
    %v641 = vadd.f32 0.0, %v640
    %v642 = vpop.f32.mrb[0].mxu0
    %643 = vdwg.mxu0
    %644 = vmatprep.subr.mxu0 0.0
    %645 = vmatpush1.msra.mxu0 %v569
    %646 = vmatprep.subr.mxu0 0.0
    %647 = vmatpush1.msra.mxu0 0.0
    %648 = vmatprep.subr.mxu0 0.0
    %649 = vmatpush1.msra.mxu0 0.0
    %650 = vmatprep.subr.mxu0 0.0
    %651 = vmatpush1.msra.mxu0 0.0
    %652 = vmatprep.subr.mxu0 0.0
    %653 = vmatpush1.msra.mxu0 0.0
    %654 = vmatprep.subr.mxu0 0.0
    %655 = vmatpush1.msra.mxu0 0.0
    %656 = vmatprep.subr.mxu0 0.0
    %657 = vmatpush1.msra.mxu0 0.0
    %658 = vmatprep.subr.mxu0 0.0
    %659 = vmatpush1.msra.mxu0 0.0
    %660 = vmatprep.subr.mxu0 0.0
    %661 = vmatpush1.msra.mxu0 0.0
    %662 = vmatprep.subr.mxu0 0.0
    %663 = vmatpush1.msra.mxu0 0.0
    %664 = vmatprep.subr.mxu0 0.0
    %665 = vmatpush1.msra.mxu0 0.0
    %666 = vmatprep.subr.mxu0 0.0
    %667 = vmatpush1.msra.mxu0 0.0
    %668 = vmatprep.subr.mxu0 0.0
    %669 = vmatpush1.msra.mxu0 0.0
    %670 = vmatprep.subr.mxu0 0.0
    %671 = vmatpush1.msra.mxu0 0.0
    %672 = vmatprep.subr.mxu0 0.0
    %673 = vmatpush1.msra.mxu0 0.0
    %674 = vmatprep.subr.mxu0 0.0
    %675 = vmatpush1.msra.mxu0 0.0
    %676 = vmatprep.subr.mxu0 0.0
    %677 = vmatpush1.msra.mxu0 0.0
    %678 = vmatprep.subr.mxu0 0.0
    %679 = vmatpush1.msra.mxu0 0.0
    %680 = vmatprep.subr.mxu0 0.0
    %681 = vmatpush1.msra.mxu0 0.0
    %682 = vmatprep.subr.mxu0 0.0
    %683 = vmatpush1.msra.mxu0 0.0
    %684 = vmatprep.subr.mxu0 0.0
    %685 = vmatpush1.msra.mxu0 0.0
    %686 = vmatprep.subr.mxu0 0.0
    %687 = vmatpush1.msra.mxu0 0.0
    %688 = vmatprep.subr.mxu0 0.0
    %689 = vmatpush1.msra.mxu0 0.0
    %690 = vmatprep.subr.mxu0 0.0
    %691 = vmatpush1.msra.mxu0 0.0
    %692 = vmatprep.subr.mxu0 0.0
    %693 = vmatpush1.msra.mxu0 0.0
    %694 = vmatprep.subr.mxu0 0.0
    %695 = vmatpush1.msra.mxu0 0.0
    %696 = vmatprep.subr.mxu0 0.0
    %697 = vmatpush1.msra.mxu0 0.0
    %698 = vmatprep.subr.mxu0 0.0
    %699 = vmatpush1.msra.mxu0 0.0
    %700 = vmatprep.subr.mxu0 0.0
    %701 = vmatpush1.msra.mxu0 0.0
    %702 = vmatprep.subr.mxu0 0.0
    %703 = vmatpush1.msra.mxu0 0.0
    %704 = vmatprep.subr.mxu0 0.0
    %705 = vmatpush1.msra.mxu0 0.0
    %706 = vmatprep.subr.mxu0 0.0
    %707 = vmatpush1.msra.mxu0 0.0
    %708 = vmatprep.mubr.f32.mxu0 0.0
    %709 = vmatmul.mubr.f32.gmra.mrb[0].mxu0 %v58
    %v710 = vpop.f32.mrb[0].mxu0
    %v711 = vadd.f32 %v641, %v710
    %v712 = vpop.f32.mrb[0].mxu0
    %713 = vdwg.mxu0
    %v714 = vlaneseq
    %v715 = vshrl.u32 %v714, 7
    %v716 = vsub.s32 1, %v715
    %v717 = vrot.slane %v52, %v716
    %v718 = vadd.f32 %v711, %v717
    %v719 = vmax.f32 %v718, 0.0
    %720 = vst [vmem:[#allocation6] sm:$0xff] %v719
    %v721 = vld [vmem:[%s7] sm:$0xff]
    %v722 = vld [vmem:[%s7 + $0x8] sm:$0xff]
    %v723 = vsel %vm56, %v719, 0.0
    %v724 = vrot.slane %v723, 4
    %v725 = vadd.f32 %v723, %v724
    %v726 = vrot.slane %v725, 2
    %v727 = vadd.f32 %v725, %v726
    %v728 = vrot.slane %v727, 1
    %v729 = vadd.f32 %v727, %v728
    %v730 = vrcp.pop 8.0
    %v731 = vmul.f32 %v729, %v730
    %v732 = vsel %vm56, %v481, 0.0
    %v733 = vsel %vm56, %v482, 0.0
    %v734 = vadd.f32 %v732, %v733
    %v735 = vrot.slane %v734, 4
    %v736 = vadd.f32 %v734, %v735
    %v737 = vrot.slane %v736, 2
    %v738 = vadd.f32 %v736, %v737
    %v739 = vrot.slane %v738, 1
    %v740 = vadd.f32 %v738, %v739
    %v741 = vrcp.pop 16.0
    %v742 = vmul.f32 %v740, %v741
    %v744 = vsel %vm56, %v742, 0
    %746 = vmatprep.subr.mxu0 0.0
    %747 = vmatpush1.msra.mxu0 %v722
    %748 = vmatprep.subr.mxu0 0.0
    %749 = vmatpush1.msra.mxu0 0.0
    %750 = vmatprep.subr.mxu0 0.0
    %751 = vmatpush1.msra.mxu0 0.0
    %752 = vmatprep.subr.mxu0 0.0
    %753 = vmatpush1.msra.mxu0 0.0
    %754 = vmatprep.subr.mxu0 0.0
    %755 = vmatpush1.msra.mxu0 0.0
    %756 = vmatprep.subr.mxu0 0.0
    %757 = vmatpush1.msra.mxu0 0.0
    %758 = vmatprep.subr.mxu0 0.0
    %759 = vmatpush1.msra.mxu0 0.0
    %760 = vmatprep.subr.mxu0 0.0
    %761 = vmatpush1.msra.mxu0 0.0
    %762 = vmatprep.subr.mxu0 0.0
    %763 = vmatpush1.msra.mxu0 0.0
    %764 = vmatprep.subr.mxu0 0.0
    %765 = vmatpush1.msra.mxu0 0.0
    %766 = vmatprep.subr.mxu0 0.0
    %767 = vmatpush1.msra.mxu0 0.0
    %768 = vmatprep.subr.mxu0 0.0
    %769 = vmatpush1.msra.mxu0 0.0
    %770 = vmatprep.subr.mxu0 0.0
    %771 = vmatpush1.msra.mxu0 0.0
    %772 = vmatprep.subr.mxu0 0.0
    %773 = vmatpush1.msra.mxu0 0.0
    %774 = vmatprep.subr.mxu0 0.0
    %775 = vmatpush1.msra.mxu0 0.0
    %776 = vmatprep.subr.mxu0 0.0
    %777 = vmatpush1.msra.mxu0 0.0
    %778 = vmatprep.subr.mxu0 0.0
    %779 = vmatpush1.msra.mxu0 0.0
    %780 = vmatprep.subr.mxu0 0.0
    %781 = vmatpush1.msra.mxu0 0.0
    %782 = vmatprep.subr.mxu0 0.0
    %783 = vmatpush1.msra.mxu0 0.0
    %784 = vmatprep.subr.mxu0 0.0
    %785 = vmatpush1.msra.mxu0 0.0
    %786 = vmatprep.subr.mxu0 0.0
    %787 = vmatpush1.msra.mxu0 0.0
    %788 = vmatprep.subr.mxu0 0.0
    %789 = vmatpush1.msra.mxu0 0.0
    %790 = vmatprep.subr.mxu0 0.0
    %791 = vmatpush1.msra.mxu0 0.0
    %792 = vmatprep.subr.mxu0 0.0
    %793 = vmatpush1.msra.mxu0 0.0
    %794 = vmatprep.subr.mxu0 0.0
    %795 = vmatpush1.msra.mxu0 0.0
    %796 = vmatprep.subr.mxu0 0.0
    %797 = vmatpush1.msra.mxu0 0.0
    %798 = vmatprep.subr.mxu0 0.0
    %799 = vmatpush1.msra.mxu0 0.0
    %800 = vmatprep.subr.mxu0 0.0
    %801 = vmatpush1.msra.mxu0 0.0
    %802 = vmatprep.subr.mxu0 0.0
    %803 = vmatpush1.msra.mxu0 0.0
    %804 = vmatprep.subr.mxu0 0.0
    %805 = vmatpush1.msra.mxu0 0.0
    %806 = vmatprep.subr.mxu0 0.0
    %807 = vmatpush1.msra.mxu0 0.0
    %808 = vmatprep.subr.mxu0 0.0
    %809 = vmatpush1.msra.mxu0 0.0
    %810 = vmatprep.mubr.f32.mxu0 0.0
    %811 = vmatmul.mubr.f32.gmra.mrb[0].mxu0 %v744
    %v812 = vpop.f32.mrb[0].mxu0
    %v813 = vadd.f32 0.0, %v812
    %v814 = vpop.f32.mrb[0].mxu0
    %815 = vdwg.mxu0
    %v817 = vsel %vm56, %v731, 0
    %819 = vmatprep.subr.mxu0 0.0
    %820 = vmatpush1.msra.mxu0 %v721
    %821 = vmatprep.subr.mxu0 0.0
    %822 = vmatpush1.msra.mxu0 0.0
    %823 = vmatprep.subr.mxu0 0.0
    %824 = vmatpush1.msra.mxu0 0.0
    %825 = vmatprep.subr.mxu0 0.0
    %826 = vmatpush1.msra.mxu0 0.0
    %827 = vmatprep.subr.mxu0 0.0
    %828 = vmatpush1.msra.mxu0 0.0
    %829 = vmatprep.subr.mxu0 0.0
    %830 = vmatpush1.msra.mxu0 0.0
    %831 = vmatprep.subr.mxu0 0.0
    %832 = vmatpush1.msra.mxu0 0.0
    %833 = vmatprep.subr.mxu0 0.0
    %834 = vmatpush1.msra.mxu0 0.0
    %835 = vmatprep.subr.mxu0 0.0
    %836 = vmatpush1.msra.mxu0 0.0
    %837 = vmatprep.subr.mxu0 0.0
    %838 = vmatpush1.msra.mxu0 0.0
    %839 = vmatprep.subr.mxu0 0.0
    %840 = vmatpush1.msra.mxu0 0.0
    %841 = vmatprep.subr.mxu0 0.0
    %842 = vmatpush1.msra.mxu0 0.0
    %843 = vmatprep.subr.mxu0 0.0
    %844 = vmatpush1.msra.mxu0 0.0
    %845 = vmatprep.subr.mxu0 0.0
    %846 = vmatpush1.msra.mxu0 0.0
    %847 = vmatprep.subr.mxu0 0.0
    %848 = vmatpush1.msra.mxu0 0.0
    %849 = vmatprep.subr.mxu0 0.0
    %850 = vmatpush1.msra.mxu0 0.0
    %851 = vmatprep.subr.mxu0 0.0
    %852 = vmatpush1.msra.mxu0 0.0
    %853 = vmatprep.subr.mxu0 0.0
    %854 = vmatpush1.msra.mxu0 0.0
    %855 = vmatprep.subr.mxu0 0.0
    %856 = vmatpush1.msra.mxu0 0.0
    %857 = vmatprep.subr.mxu0 0.0
    %858 = vmatpush1.msra.mxu0 0.0
    %859 = vmatprep.subr.mxu0 0.0
    %860 = vmatpush1.msra.mxu0 0.0
    %861 = vmatprep.subr.mxu0 0.0
    %862 = vmatpush1.msra.mxu0 0.0
    %863 = vmatprep.subr.mxu0 0.0
    %864 = vmatpush1.msra.mxu0 0.0
    %865 = vmatprep.subr.mxu0 0.0
    %866 = vmatpush1.msra.mxu0 0.0
    %867 = vmatprep.subr.mxu0 0.0
    %868 = vmatpush1.msra.mxu0 0.0
    %869 = vmatprep.subr.mxu0 0.0
    %870 = vmatpush1.msra.mxu0 0.0
    %871 = vmatprep.subr.mxu0 0.0
    %872 = vmatpush1.msra.mxu0 0.0
    %873 = vmatprep.subr.mxu0 0.0
    %874 = vmatpush1.msra.mxu0 0.0
    %875 = vmatprep.subr.mxu0 0.0
    %876 = vmatpush1.msra.mxu0 0.0
    %877 = vmatprep.subr.mxu0 0.0
    %878 = vmatpush1.msra.mxu0 0.0
    %879 = vmatprep.subr.mxu0 0.0
    %880 = vmatpush1.msra.mxu0 0.0
    %881 = vmatprep.subr.mxu0 0.0
    %882 = vmatpush1.msra.mxu0 0.0
    %883 = vmatprep.mubr.f32.mxu0 0.0
    %884 = vmatmul.mubr.f32.gmra.mrb[0].mxu0 %v817
    %v885 = vpop.f32.mrb[0].mxu0
    %v886 = vadd.f32 %v813, %v885
    %v887 = vpop.f32.mrb[0].mxu0
    %888 = vdwg.mxu0
    %v890 = vrot.slane %v52, 2
    %v892 = vadd.f32 %v886, %v890
    %893 = vst [vmem:[#allocation8] sm:$0x1] %v892
    // Predicated region
    $region42: #{tpu_custom_call.1} parent=1 // pred_check
      _
    $region43: #{tpu_custom_call.1} parent=1 // pred_check_branch
      %895 = sbr.rel (0) target = $region45
    $region44: #{tpu_custom_call.1} parent=1 // pred_region
      %s897 = ssub.s32 256, 256
      %898 = vsyncadd [#allocation4], %s897
      %s899 = sshll.u32 [#allocation5], 4
      %s900 = int_to_ptr.vmem [resolvable:$true] %s899
      %905 = dma.vmem_to_hbm [thread:$0]  %s900, 256, %s9, [#allocation4], 128, 128, 8
    $region45: #{tpu_custom_call.1} parent=1 // pred_fallthru
      _
    // Predicated region
    $region46: #{tpu_custom_call.1} parent=1 // pred_check
      _
    $region47: #{tpu_custom_call.1} parent=1 // pred_check_branch
      %907 = sbr.rel (0) target = $region49
    $region48: #{tpu_custom_call.1} parent=1 // pred_region
      %s909 = ssub.s32 128, 128
      %910 = vsyncadd [#allocation7], %s909
      %s912 = sshll.u32 [#allocation6], 4
      %s913 = int_to_ptr.vmem [resolvable:$true] %s912
      %915 = dma.vmem_to_hbm [thread:$0]  %s913, 128, %s10, [#allocation7]
    $region49: #{tpu_custom_call.1} parent=1 // pred_fallthru
      _
    // Predicated region
    $region50: #{tpu_custom_call.1} parent=1 // pred_check
      _
    $region51: #{tpu_custom_call.1} parent=1 // pred_check_branch
      %917 = sbr.rel (0) target = $region53
    $region52: #{tpu_custom_call.1} parent=1 // pred_region
      %s919 = ssub.s32 16, 16
      %920 = vsyncadd [#allocation7], %s919
      %s922 = sshll.u32 [#allocation8], 4
      %s923 = int_to_ptr.vmem [resolvable:$true] %s922
      %925 = dma.vmem_to_hbm [thread:$0]  %s923, 16, %s11, [#allocation7]
    $region53: #{tpu_custom_call.1} parent=1 // pred_fallthru
      _
    // Predicated region
    $region54: #{tpu_custom_call.1} parent=1 // pred_check
      _
    $region55: #{tpu_custom_call.1} parent=1 // pred_check_branch
      %927 = sbr.rel (0) target = $region57
    $region56: #{tpu_custom_call.1} parent=1 // pred_region
      %928 = dma.done [#allocation4], 256
    $region57: #{tpu_custom_call.1} parent=1 // pred_fallthru
      _
    // Predicated region
    $region58: #{tpu_custom_call.1} parent=1 // pred_check
      _
    $region59: #{tpu_custom_call.1} parent=1 // pred_check_branch
      %930 = sbr.rel (0) target = $region61
    $region60: #{tpu_custom_call.1} parent=1 // pred_region
      %931 = dma.done [#allocation7], 128
    $region61: #{tpu_custom_call.1} parent=1 // pred_fallthru
      _
    // Predicated region
    $region62: #{tpu_custom_call.1} parent=1 // pred_check
      _
    $region63: #{tpu_custom_call.1} parent=1 // pred_check_branch
      %933 = sbr.rel (0) target = $region65
    $region64: #{tpu_custom_call.1} parent=1 // pred_region
      %934 = dma.done [#allocation7], 16
    $region65: #{tpu_custom_call.1} parent=1 // pred_fallthru
      _
    %935 = vsyncpa [#allocation3], 1
    %936 = vsyncpa [#allocation4], 1
    %937 = vsyncpa [#allocation7], 1

</llo_original>
